<compile_context>
chip_gen: v5e
topology: v5e:2x2
jax: 0.10.0
libtpu: 0.0.40
codegen_flags: <defaults>
</compile_context>

<pallas_src>
import functools

import jax
import jax.numpy as jnp
from jax import lax
from jax.experimental import pallas as pl
from jax.experimental.pallas import tpu as pltpu

_UNROLL_CC_MAX = 8  # channel counts above this use lax.fori_loop in-kernel


# ---------------------------------------------------------------------------
# Kernel body
# ---------------------------------------------------------------------------
def _pixel_shuffle_kernel(x_ref, o_ref, row_scr, col_scr, *, r, c, nb, mode):
    """One grid step: NB images x (c*r*r channels) x TH rows -> shuffled block.

    x_ref   : (NB, c*r*r, TH, W)    input block (VMEM)
    o_ref   : (NB, c,     TH*r, W*r) output block (VMEM)
    row_scr : (TH*r, W)              rows interleaved over the r row-phases
    col_scr : (W*r, TH*r)            transposed output channel (cols interleaved)
    """
    th = x_ref.shape[2]
    w = x_ref.shape[3]
    scr_dtype = row_scr.dtype

    def emit(n, cc):
        # Build one (TH*r, W*r) output channel for image `n`, channel `cc`.
        for b in range(r):
            # Row interleave: row_scr[i*r + a, :] = x[chan(a, b, cc), i, :]
            for a in range(r):
                if mode == "caffe":
                    chan = (a * r + b) * c + cc
                else:  # "pytorch"
                    chan = cc * (r * r) + a * r + b
                row_scr[pl.ds(a, th, stride=r), :] = (
                    x_ref[n, chan].astype(scr_dtype))
            # Column interleave in the transposed domain so the strided axis
            # stays on sublanes: col_scr[j*r + b, i*r + a] = x[chan, i, j]
            col_scr[pl.ds(b, w, stride=r), :] = row_scr[...].T
        # Transpose back; contiguous lane-dense store into the output block.
        o_ref[n, cc] = col_scr[...].T.astype(o_ref.dtype)

    for n in range(nb):                       # nb is small (<= 8) by choice
        if c <= _UNROLL_CC_MAX:
            for cc in range(c):               # tiny, fully unrolled
                emit(n, cc)
        else:
            # Large channel counts: tight scf.for body instead of a huge unroll.
            def body(cc, carry):
                emit(n, cc)
                return carry

            unroll = 2 if c % 2 == 0 else 1
            lax.fori_loop(0, c, body, 0, unroll=unroll)


# ---------------------------------------------------------------------------
# Tile / budget selection
# ---------------------------------------------------------------------------
def _round_up(x, m):
    return -(-x // m) * m


def _sublane(dtype):
    return {4: 8, 2: 16, 1: 32}.get(jnp.dtype(dtype).itemsize, 8)


def _padded_bytes_2d(s2, s1, dtype):
    """VMEM bytes of a 2-D tile: second-minor padded to the sublane multiple,
    minor padded to 128 lanes."""
    it = jnp.dtype(dtype).itemsize
    return _round_up(s2, _sublane(dtype)) * _round_up(s1, 128) * it


def _vmem_budget_and_limit():
    """Per-generation VMEM budget for blocks+scratch and vmem_limit_bytes."""
    cap = 64 * 1024 * 1024                      # conservative default (v7x)
    try:
        info = pltpu.get_tpu_info()
        cap_attr = getattr(info, "vmem_capacity_bytes", None)
        if cap_attr:
            cap = int(cap_attr)
    except Exception:
        pass
    if cap < 32 * 1024 * 1024:                  # guard against bogus values
        cap = 64 * 1024 * 1024
    budget = min(56 * 1024 * 1024, (2 * cap) // 5)   # ~51 MiB @128, ~26 MiB @64
    limit = min(100 * 1024 * 1024, (3 * cap) // 4)   # ~96 MiB @128, ~48 MiB @64
    return budget, limit


def _choose_tiles(N, C, H, W, r, x_dtype, scr_dtype, mode, budget):
    """Pick (NB, CB, TH): batch / output-channel / H tile sizes."""
    c = C // (r * r)
    sub_in = _sublane(x_dtype)

    def footprint(nb, cb, th):
        inp = nb * (cb * r * r) * _padded_bytes_2d(th, W, x_dtype)
        out = nb * cb * _padded_bytes_2d(th * r, W * r, x_dtype)
        scr = (_padded_bytes_2d(th * r, W, scr_dtype)
               + _padded_bytes_2d(W * r, th * r, scr_dtype))
        return 2 * (inp + out) + scr            # in/out blocks double-buffered

    def fits(nb, cb, th):
        return footprint(nb, cb, th) <= budget

    def divisors_desc(x):
        return [d for d in range(x, 0, -1) if x % d == 0]

    # 1) Prefer full-H tiles (long contiguous DMA runs); shrink channel groups
    #    ('pytorch' only: contiguous r*r input-channel groups) before H.
    th, cb = H, c
    if not fits(1, cb, th) and mode == "pytorch":
        cb = next((d for d in divisors_desc(c) if fits(1, d, th)), 1)
    if not fits(1, cb, th):
        th_cands = [d for d in divisors_desc(H) if d == H or d % sub_in == 0]
        th = next((d for d in th_cands if fits(1, cb, d)), th_cands[-1])

    # 2) Batch several small images per block to amortize the ~0.35us/step
    #    overhead (bounded so the unrolled body stays small when c is tiny).
    nb_cands = [d for d in range(min(N, 8), 0, -1)
                if N % d == 0 and (c > _UNROLL_CC_MAX or d * c <= 32)]
    if not nb_cands:
        nb_cands = [1]
    nb = next((d for d in nb_cands if fits(d, cb, th)), 1)

    # 3) Keep at least 2 grid steps when possible so both v7x TensorCores get
    #    work and the BlockSpec pipeline has something to overlap.
    if (c // cb) * (H // th) == 1 and N >= 2 and N // nb < 2:
        nb = max(d for d in nb_cands if N // d >= 2)
    if (N // nb) * (c // cb) * (H // th) == 1:
        if mode == "pytorch" and c > 1:
            cb = max(d for d in divisors_desc(c) if c // d >= 2)
        elif H % (2 * sub_in) == 0:
            th = H // 2
    return nb, cb, th


# ---------------------------------------------------------------------------
# Public wrapper
# ---------------------------------------------------------------------------
def pixel_shuffle_align(x, upscale_factor=2, mode="caffe"):
    """Pallas implementation of PixelShuffleAlign.forward.  x: (N, C, H, W)."""
    if x.ndim != 4:
        raise ValueError(f"input tensor shape {x.shape} is not supported.")
    if mode not in ("caffe", "pytorch"):
        raise NotImplementedError(f"{mode} mode is not implemented")
    N, C, H, W = x.shape
    r = int(upscale_factor)
    if r == 1:
        return x
    if C % (r * r) != 0:
        raise ValueError("C must be divisible by upscale_factor**2")
    c = C // (r * r)

    itemsize = jnp.dtype(x.dtype).itemsize
    # Stage the interleave in a 32-bit container for sub-32-bit dtypes so the
    # stride-r sublane stores never operate at packed half/quarter-sublane
    # granularity; the cast f32<->bf16 / i32<->i8 is exact.
    if itemsize >= 4:
        scr_dtype = x.dtype
    elif jnp.issubdtype(x.dtype, jnp.floating):
        scr_dtype = jnp.float32
    else:
        scr_dtype = jnp.int32

    budget, vmem_limit = _vmem_budget_and_limit()
    NB, CB, TH = _choose_tiles(N, C, H, W, r, x.dtype, scr_dtype, mode, budget)
    grid = (N // NB, c // CB, H // TH)

    kernel = functools.partial(_pixel_shuffle_kernel, r=r, c=CB, nb=NB, mode=mode)
    bytes_accessed = 2 * N * C * H * W * itemsize      # one read + one write

    return pl.pallas_call(
        kernel,
        out_shape=jax.ShapeDtypeStruct((N, c, H * r, W * r), x.dtype),
        grid=grid,
        in_specs=[pl.BlockSpec((NB, CB * r * r, TH, W),
                               lambda n, ch, t: (n, ch, t, 0))],
        out_specs=pl.BlockSpec((NB, CB, TH * r, W * r),
                               lambda n, ch, t: (n, ch, t, 0)),
        scratch_shapes=[
            pltpu.VMEM((TH * r, W), scr_dtype),
            pltpu.VMEM((W * r, TH * r), scr_dtype),
        ],
        compiler_params=pltpu.CompilerParams(
            dimension_semantics=("parallel", "parallel", "parallel"),
            vmem_limit_bytes=vmem_limit,
        ),
        cost_estimate=pl.CostEstimate(
            flops=0, transcendentals=0, bytes_accessed=bytes_accessed),
    )(x)


# ---------------------------------------------------------------------------
# Pure-JAX reference (mirrors the PyTorch module) for validation
# ---------------------------------------------------------------------------
def _reference_pixel_shuffle_align(x, upscale_factor=2, mode="caffe"):
    N, C, H, W = x.shape
    r = upscale_factor
    c = C // (r * r)
    if mode == "caffe":
        x6 = x.reshape(N, r, r, c, H, W)
        x6 = jnp.transpose(x6, (0, 3, 4, 1, 5, 2))
    elif mode == "pytorch":
        x6 = x.reshape(N, c, r, r, H, W)
        x6 = jnp.transpose(x6, (0, 1, 4, 2, 5, 3))
    else:
        raise NotImplementedError
    return x6.reshape(N, c, H * r, W * r)


if __name__ == "__main__":
    key = jax.random.PRNGKey(0)

    # Default module configuration: upscale_factor=2, mode='caffe'.
    x = jax.random.uniform(key, (2, 4, 16, 16), dtype=jnp.float32)
    out = jax.block_until_ready(pixel_shuffle_align(x, 2, "caffe"))
    ref = _reference_pixel_shuffle_align(x, 2, "caffe")
    assert out.shape == (2, 1, 32, 32)
    assert bool(jnp.array_equal(out, ref)), float(jnp.max(jnp.abs(out - ref)))

    # 'pytorch' mode on the same tensor.
    out_pt = jax.block_until_ready(pixel_shuffle_align(x, 2, "pytorch"))
    ref_pt = _reference_pixel_shuffle_align(x, 2, "pytorch")
    assert bool(jnp.array_equal(out_pt, ref_pt))

    # Larger channel count: exercises the in-kernel fori_loop channel path and
    # (for 'pytorch' mode) the channel-group grid axis.
    x2 = jax.random.uniform(jax.random.PRNGKey(0), (1, 128, 8, 128),
                            dtype=jnp.float32)
    for m in ("pytorch", "caffe"):
        o2 = jax.block_until_ready(pixel_shuffle_align(x2, 2, m))
        r2 = _reference_pixel_shuffle_align(x2, 2, m)
        assert o2.shape == (1, 32, 16, 256)
        assert bool(jnp.array_equal(o2, r2)), m

    print("KERNEL_OK")
</pallas_src>

<mosaic_0001>
module attributes {stable_mosaic.version = 11 : i64} {
  func.func @_pixel_shuffle_kernel(%arg0: i32, %arg1: i32, %arg2: i32, %arg3: memref<1x4x16x16xf32, #tpu.memory_space<vmem>>, %arg4: memref<1x1x32x32xf32, #tpu.memory_space<vmem>>, %arg5: memref<32x16xf32, #tpu.memory_space<vmem>>, %arg6: memref<32x32xf32, #tpu.memory_space<vmem>>) attributes {dimension_semantics = [#tpu.dimension_semantics<parallel>, #tpu.dimension_semantics<parallel>, #tpu.dimension_semantics<parallel>], iteration_bounds = array<i64: 2, 1, 1>, scalar_prefetch = 0 : i64, scratch_operands = 2 : i64, tpu.core_type = #tpu.core_type<tc>, window_params = [{transform_indices = @transform_0, window_bounds = array<i64: 1, 4, 16, 16>}, {transform_indices = @transform_1, window_bounds = array<i64: 1, 1, 32, 32>}]} {
    %c0 = arith.constant 0 : index
    %c0_0 = arith.constant 0 : index
    %c0_1 = arith.constant 0 : index
    %c0_2 = arith.constant 0 : index
    %0 = vector.load %arg3[%c0, %c0_0, %c0_1, %c0_2] : memref<1x4x16x16xf32, #tpu.memory_space<vmem>>, vector<1x1x16x16xf32>
    %1 = vector.shape_cast %0 : vector<1x1x16x16xf32> to vector<16x16xf32>
    %c0_3 = arith.constant 0 : index
    %c0_4 = arith.constant 0 : index
    %2 = tpu.strided_load %arg5[%c0_3, %c0_4] {strides = array<i32: 2, 1>} : memref<32x16xf32, #tpu.memory_space<vmem>>, vector<16x16xf32>
    tpu.strided_store %arg5[%c0_3, %c0_4], %1 {strides = array<i32: 2, 1>} : memref<32x16xf32, #tpu.memory_space<vmem>>, vector<16x16xf32>
    %c0_5 = arith.constant 0 : index
    %c2 = arith.constant 2 : index
    %c0_6 = arith.constant 0 : index
    %c0_7 = arith.constant 0 : index
    %3 = vector.load %arg3[%c0_5, %c2, %c0_6, %c0_7] : memref<1x4x16x16xf32, #tpu.memory_space<vmem>>, vector<1x1x16x16xf32>
    %4 = vector.shape_cast %3 : vector<1x1x16x16xf32> to vector<16x16xf32>
    %c1 = arith.constant 1 : index
    %c0_8 = arith.constant 0 : index
    %5 = tpu.strided_load %arg5[%c1, %c0_8] {strides = array<i32: 2, 1>} : memref<32x16xf32, #tpu.memory_space<vmem>>, vector<16x16xf32>
    tpu.strided_store %arg5[%c1, %c0_8], %4 {strides = array<i32: 2, 1>} : memref<32x16xf32, #tpu.memory_space<vmem>>, vector<16x16xf32>
    %c0_9 = arith.constant 0 : index
    %c0_10 = arith.constant 0 : index
    %6 = vector.load %arg5[%c0_9, %c0_10] : memref<32x16xf32, #tpu.memory_space<vmem>>, vector<32x16xf32>
    %7 = tpu.transpose %6, [1, 0] : vector<32x16xf32> -> vector<16x32xf32>
    %c0_11 = arith.constant 0 : index
    %c0_12 = arith.constant 0 : index
    %8 = tpu.strided_load %arg6[%c0_11, %c0_12] {strides = array<i32: 2, 1>} : memref<32x32xf32, #tpu.memory_space<vmem>>, vector<16x32xf32>
    tpu.strided_store %arg6[%c0_11, %c0_12], %7 {strides = array<i32: 2, 1>} : memref<32x32xf32, #tpu.memory_space<vmem>>, vector<16x32xf32>
    %c0_13 = arith.constant 0 : index
    %c1_14 = arith.constant 1 : index
    %c0_15 = arith.constant 0 : index
    %c0_16 = arith.constant 0 : index
    %9 = vector.load %arg3[%c0_13, %c1_14, %c0_15, %c0_16] : memref<1x4x16x16xf32, #tpu.memory_space<vmem>>, vector<1x1x16x16xf32>
    %10 = vector.shape_cast %9 : vector<1x1x16x16xf32> to vector<16x16xf32>
    %c0_17 = arith.constant 0 : index
    %c0_18 = arith.constant 0 : index
    %11 = tpu.strided_load %arg5[%c0_17, %c0_18] {strides = array<i32: 2, 1>} : memref<32x16xf32, #tpu.memory_space<vmem>>, vector<16x16xf32>
    tpu.strided_store %arg5[%c0_17, %c0_18], %10 {strides = array<i32: 2, 1>} : memref<32x16xf32, #tpu.memory_space<vmem>>, vector<16x16xf32>
    %c0_19 = arith.constant 0 : index
    %c3 = arith.constant 3 : index
    %c0_20 = arith.constant 0 : index
    %c0_21 = arith.constant 0 : index
    %12 = vector.load %arg3[%c0_19, %c3, %c0_20, %c0_21] : memref<1x4x16x16xf32, #tpu.memory_space<vmem>>, vector<1x1x16x16xf32>
    %13 = vector.shape_cast %12 : vector<1x1x16x16xf32> to vector<16x16xf32>
    %c1_22 = arith.constant 1 : index
    %c0_23 = arith.constant 0 : index
    %14 = tpu.strided_load %arg5[%c1_22, %c0_23] {strides = array<i32: 2, 1>} : memref<32x16xf32, #tpu.memory_space<vmem>>, vector<16x16xf32>
    tpu.strided_store %arg5[%c1_22, %c0_23], %13 {strides = array<i32: 2, 1>} : memref<32x16xf32, #tpu.memory_space<vmem>>, vector<16x16xf32>
    %c0_24 = arith.constant 0 : index
    %c0_25 = arith.constant 0 : index
    %15 = vector.load %arg5[%c0_24, %c0_25] : memref<32x16xf32, #tpu.memory_space<vmem>>, vector<32x16xf32>
    %16 = tpu.transpose %15, [1, 0] : vector<32x16xf32> -> vector<16x32xf32>
    %c1_26 = arith.constant 1 : index
    %c0_27 = arith.constant 0 : index
    %17 = tpu.strided_load %arg6[%c1_26, %c0_27] {strides = array<i32: 2, 1>} : memref<32x32xf32, #tpu.memory_space<vmem>>, vector<16x32xf32>
    tpu.strided_store %arg6[%c1_26, %c0_27], %16 {strides = array<i32: 2, 1>} : memref<32x32xf32, #tpu.memory_space<vmem>>, vector<16x32xf32>
    %c0_28 = arith.constant 0 : index
    %c0_29 = arith.constant 0 : index
    %18 = vector.load %arg6[%c0_28, %c0_29] : memref<32x32xf32, #tpu.memory_space<vmem>>, vector<32x32xf32>
    %19 = tpu.transpose %18, [1, 0] : vector<32x32xf32> -> vector<32x32xf32>
    %c0_30 = arith.constant 0 : index
    %c0_31 = arith.constant 0 : index
    %c0_32 = arith.constant 0 : index
    %c0_33 = arith.constant 0 : index
    %20 = vector.load %arg4[%c0_30, %c0_31, %c0_32, %c0_33] : memref<1x1x32x32xf32, #tpu.memory_space<vmem>>, vector<1x1x32x32xf32>
    %21 = vector.shape_cast %20 : vector<1x1x32x32xf32> to vector<32x32xf32>
    %22 = vector.shape_cast %19 : vector<32x32xf32> to vector<1x1x32x32xf32>
    tpu.vector_store %arg4[%c0_30, %c0_31, %c0_32, %c0_33], %22 {strides = array<i32>} : memref<1x1x32x32xf32, #tpu.memory_space<vmem>>, vector<1x1x32x32xf32>,
    return
  }
  func.func @transform_0(%arg0: i32, %arg1: i32, %arg2: i32) -> (i32, i32, i32, i32) {
    %c0_i32 = arith.constant 0 : i32
    %c0_i32_0 = arith.constant 0 : i32
    return %arg0, %arg1, %arg2, %c0_i32 : i32, i32, i32, i32
  }
  func.func @transform_1(%arg0: i32, %arg1: i32, %arg2: i32) -> (i32, i32, i32, i32) {
    %c0_i32 = arith.constant 0 : i32
    %c0_i32_0 = arith.constant 0 : i32
    return %arg0, %arg1, %arg2, %c0_i32 : i32, i32, i32, i32
  }
}

</mosaic_0001>

<llo_original>
// kernel: tpu_custom_call.1
$region0: #{tpu_custom_call.1}
  #allocation0 [shape = 'u32[]', space=smem, size = 0x4, offset = 0x4, fixed_abs, tag = 'smem constant byte address 0x4 - core index']
  #allocation1 [shape = 'u32[72,128]{1,0:T(1,128)}', space=vmem, size = 0x9000, scoped, tag = 'internal scratch']
  #allocation2 [shape = 'f32[32,16]{1,0:T(8,128)}', space=vmem, size = 0x4000, scoped, tag = 'scratch operand']
  #allocation3 [shape = 'f32[32,32]{1,0:T(8,128)}', space=vmem, size = 0x4000, scoped, tag = 'scratch operand']
  %s0 = inlined_call_operand.hbm [shape: f32[2,4,16,16], index: 0, kind: input, shape index: {}]
  %s1 = inlined_call_operand.hbm [shape: f32[2,1,32,32], index: 1, kind: output, shape index: {}]
  %s2 = sld [smem:[#allocation0]]
  $region41: #{tpu_custom_call.1} parent=0
    _
  %s4 = ssub.s32 1, %s2
  %s5 = scalar_select 0, %s4, %s2
  $region1: #{tpu_custom_call.1} parent=0
    #allocation4 [shape = 'u8[65536]{0}', space=vmem, size = 0x10000, scoped, tag = 'input window, operand 0']
    #allocation5 [shape = 's32[2]{0}', space=sflag, size = 0x8, scoped, tag = 'scoped memory for tpu_custom_call.1']
    #allocation6 [shape = 's32[2]{0}', space=sflag, size = 0x8, scoped, tag = 'scoped memory for tpu_custom_call.1']
    #allocation7 [shape = 'u8[32768]{0}', space=vmem, size = 0x8000, scoped, tag = 'output window, operand 0']
    %6 = vsyncpa [#allocation5], 0
    %s7 = scalar_lea.sflag [#allocation5], 1
    %8 = vsyncpa %s7, 0
    %9 = vsyncpa [#allocation6], 0
    %s10 = scalar_lea.sflag [#allocation6], 1
    %11 = vsyncpa %s10, 0
    loop: start=0, step=1, limit=4
    $region2: #{tpu_custom_call.1} parent=1 // loop_pre_header
      _
    $region3: #{tpu_custom_call.1} parent=1 // loop_header
      %s13 = sphi 0, %s17
      %p14 = scmp.ge.s32.totalorder %s13, 4
      %s20 = sphi 0, %s39
      %s21 = sphi 0, %s35
      %s22 = sphi 0, %s31
      %s23 = sphi 0, %s20
      %s24 = sphi 0, %s21
      %s25 = sphi 0, %s22
      %s26 = sphi 0, %s23
      %s27 = sphi 0, %s24
      %s28 = sphi 0, %s25
      %s46 = sphi 0, %s48
      %s49 = sphi 0, %s46
      %s50 = sphi 0, %s49
      %s66 = sphi 0, %s50
      %s76 = sphi 0, %s78
      %s79 = sphi 0, %s76
      %s80 = sphi 0, %s79
      %s96 = sphi 0, %s80
    $region4: #{tpu_custom_call.1} parent=1 // loop_header_branch
      %16 = sbr.rel (%p14) target = $region8
    $region5: #{tpu_custom_call.1} parent=1 // loop_body
      %s18 = ssub.s32 %s13, 1
      %s19 = ssub.s32 %s13, 2
      %s29 = sadd.s32 1, %s22
      %p30 = scmp.ge.s32.totalorder %s29, 1
      %s31 = scalar_select %p30, 0, %s29
      %s32 = sadd.s32 1, %s21
      %s33 = scalar_select %p30, %s32, %s21
      %p34 = scmp.ge.s32.totalorder %s33, 1
      %s35 = scalar_select %p34, 0, %s33
      %s36 = sadd.s32 1, %s20
      %s37 = scalar_select %p34, %s36, %s20
      %p38 = scmp.ge.s32.totalorder %s37, 2
      %s39 = scalar_select %p38, 0, %s37
      %s40 = ssub.s32 %s20, %s39
      %s41 = ssub.s32 %s21, %s35
      %s42 = sor.u32 %s40, %s41
      %s43 = ssub.s32 %s22, %s31
      %s44 = sor.u32 %s42, %s43
      %p45 = scmp.eq.s32.totalorder %s44, 0
      %s47 = sadd.s32 %s46, 1
      %s48 = scalar_select %p45, %s46, %s47
      %p51 = pneg %p45
      %p52 = scmp.eq.s32.totalorder %s13, 1
      %p53 = por %p51, %p52
      %p54 = scmp.ne.s32.totalorder %s46, %s49
      %p55 = scmp.eq.s32.totalorder %s13, 0
      %p56 = por %p54, %p55
      %p57 = scmp.ne.s32.totalorder %s46, %s49
      %p58 = scmp.eq.s32.totalorder %s18, 1
      %p59 = por %p57, %p58
      %p60 = scmp.ne.s32.totalorder %s49, %s50
      %p61 = scmp.eq.s32.totalorder %s18, 0
      %p62 = por %p60, %p61
      %p63 = scmp.ne.s32.totalorder %s49, %s50
      %p64 = scmp.eq.s32.totalorder %s19, 1
      %p65 = por %p63, %p64
      %p67 = scmp.ne.s32.totalorder %s50, %s66
      %p68 = scmp.eq.s32.totalorder %s19, 0
      %p69 = por %p67, %p68
      %s70 = ssub.s32 %s20, %s39
      %s71 = ssub.s32 %s21, %s35
      %s72 = sor.u32 %s70, %s71
      %s73 = ssub.s32 %s22, %s31
      %s74 = sor.u32 %s72, %s73
      %p75 = scmp.eq.s32.totalorder %s74, 0
      %s77 = sadd.s32 %s76, 1
      %s78 = scalar_select %p75, %s76, %s77
      %p81 = pneg %p75
      %p82 = scmp.eq.s32.totalorder %s13, 1
      %p83 = por %p81, %p82
      %p84 = scmp.ne.s32.totalorder %s76, %s79
      %p85 = scmp.eq.s32.totalorder %s13, 0
      %p86 = por %p84, %p85
      %p87 = scmp.ne.s32.totalorder %s76, %s79
      %p88 = scmp.eq.s32.totalorder %s18, 1
      %p89 = por %p87, %p88
      %p90 = scmp.ne.s32.totalorder %s79, %s80
      %p91 = scmp.eq.s32.totalorder %s18, 0
      %p92 = por %p90, %p91
      %p93 = scmp.ne.s32.totalorder %s79, %s80
      %p94 = scmp.eq.s32.totalorder %s19, 1
      %p95 = por %p93, %p94
      %p97 = scmp.ne.s32.totalorder %s80, %s96
      %p98 = scmp.eq.s32.totalorder %s19, 0
      %p99 = por %p97, %p98
      %p100 = scmp.le.s32.totalorder 1, %s13
      %p101 = scmp.lt.s32.totalorder %s13, 3
      %p102 = pnand %p100, %p101
      %p103 = pneg %p102
      // Predicated region
      $region9: #{tpu_custom_call.1} parent=5 // pred_check
        _
      $region10: #{tpu_custom_call.1} parent=5 // pred_check_branch
        %105 = sbr.rel (%p102) target = $region12
      $region11: #{tpu_custom_call.1} parent=5 // pred_region
        %s106 = ssub.s32 %s13, 1
      $region12: #{tpu_custom_call.1} parent=5 // pred_fallthru
        _
      %p107 = scmp.lt.s32.totalorder %s13, 2
      // Predicated region
      $region13: #{tpu_custom_call.1} parent=5 // pred_check
        %p108 = pneg %p107
      $region14: #{tpu_custom_call.1} parent=5 // pred_check_branch
        %110 = sbr.rel (%p108) target = $region16
      $region15: #{tpu_custom_call.1} parent=5 // pred_region
        // Predicated region
        $region17: #{tpu_custom_call.1} parent=15 // pred_check
          %p111 = pneg %p56
        $region18: #{tpu_custom_call.1} parent=15 // pred_check_branch
          %113 = sbr.rel (%p111) target = $region20
        $region19: #{tpu_custom_call.1} parent=15 // pred_region
          %s114 = sand.u32 %s46, 1
          %s115 = scalar_lea.sflag [#allocation5], %s114
          %s116 = sand.u32 %s46, 1
          %s117 = smul.addr %s116, 64
          %s118 = scalar_lea.vmem [#allocation4], %s117
          %s119 = smul.u32 4, %s21
          %s120 = smul.u32 2, %s22
          %122 = vsyncadd %s115, 0
          %s123 = smul.addr %s119, 2
          %s124 = sadd.s32 %s120, %s123
          %s125 = smul.addr %s20, 8
          %s126 = sadd.s32 %s124, %s125
          %s127 = smul.addr %s126, 8
          %s128 = scalar_lea.hbm %s0, %s127
          %s129 = sshll.u32 %s128, 4
          %s130 = int_to_ptr.hbm [resolvable:$true] %s129
          %s131 = sshll.u32 %s118, 4
          %s132 = int_to_ptr.vmem [resolvable:$true] %s131
          %137 = dma.hbm_to_vmem [thread:$0]  %s130, 1024, %s132, %s115, 128, 128, 8
        $region20: #{tpu_custom_call.1} parent=15 // pred_fallthru
          _
      $region16: #{tpu_custom_call.1} parent=5 // pred_fallthru
        _
      %p138 = scmp.le.s32.totalorder 1, %s13
      %p139 = scmp.lt.s32.totalorder %s13, 3
      %p140 = pnand %p138, %p139
      %p141 = pneg %p140
      // Predicated region
      $region21: #{tpu_custom_call.1} parent=5 // pred_check
        _
      $region22: #{tpu_custom_call.1} parent=5 // pred_check_branch
        %143 = sbr.rel (%p140) target = $region24
      $region23: #{tpu_custom_call.1} parent=5 // pred_region
        %s144 = ssub.s32 %s13, 1
        %s145 = sand.u32 %s49, 1
        %s146 = scalar_lea.sflag [#allocation5], %s145
        %s147 = sand.u32 %s49, 1
        %s148 = smul.addr %s147, 64
        %s149 = scalar_lea.vmem [#allocation4], %s148
        // Predicated region
        $region25: #{tpu_custom_call.1} parent=23 // pred_check
          %p150 = pneg %p62
        $region26: #{tpu_custom_call.1} parent=23 // pred_check_branch
          %152 = sbr.rel (%p150) target = $region28
        $region27: #{tpu_custom_call.1} parent=23 // pred_region
          %154 = dma.done %s146, 1024
        $region28: #{tpu_custom_call.1} parent=23 // pred_fallthru
          _
        %s155 = sand.u32 %s49, 1
        %s156 = scalar_lea.sflag [#allocation5], %s155
        %s157 = sand.u32 %s49, 1
        %s158 = smul.addr %s157, 64
        %s159 = scalar_lea.vmem [#allocation4], %s158
        %p160 = pneg %p62
        %p161 = pneg %p59
        %p162 = pneg %p92
        %p163 = pneg %p89
        %s164 = sand.u32 %s79, 1
        %s165 = scalar_lea.sflag [#allocation6], %s164
        %s166 = sand.u32 %s79, 1
        %s167 = smul.addr %s166, 32
        %s168 = scalar_lea.vmem [#allocation7], %s167
        %s169 = smul.u32 4, %s24
        %s170 = smul.u32 2, %s25
        %s171 = smul.u32 4, %s25
        %v172 = vld [vmem:[%s149] sm:$0xff]
        %v173 = vld [vmem:[%s149 + $0x8] sm:$0xff]
        %174 = vst [vmem:[#allocation2] ss:$2 sm:$0xff] %v172
        %s175 = scalar_lea.vmem [#allocation2], 16
        %176 = vst [vmem:[%s175] ss:$2 sm:$0xff] %v173
        %s177 = scalar_lea.vmem %s149, 32 [#allocation4]
        %v178 = vld [vmem:[%s177] sm:$0xff]
        %v179 = vld [vmem:[%s177 + $0x8] sm:$0xff]
        %s180 = scalar_lea.vmem [#allocation2], 1
        %181 = vst [vmem:[%s180] ss:$2 sm:$0xff] %v178
        %s182 = scalar_lea.vmem [#allocation2], 17
        %183 = vst [vmem:[%s182] ss:$2 sm:$0xff] %v179
        %v184 = vld [vmem:[#allocation2] sm:$0xff]
        %v185 = vld [vmem:[#allocation2 + $0x8] sm:$0xff]
        %v186 = vld [vmem:[#allocation2 + $0x10] sm:$0xff]
        %v187 = vld [vmem:[#allocation2 + $0x18] sm:$0xff]
        %188 = vxpose.xlu0.b32.start [1/16] %v184, 128
        %189 = vxpose.xlu0.b32.cont [2/16] %v185, 128
        %190 = vxpose.xlu0.b32.cont [3/16] %v186, 128
        %191 = vxpose.xlu0.b32.cont [4/16] %v187, 128
        %192 = vxpose.xlu0.b32.cont [5/16] 0.0, 128
        %193 = vxpose.xlu0.b32.cont [6/16] 0.0, 128
        %194 = vxpose.xlu0.b32.cont [7/16] 0.0, 128
        %195 = vxpose.xlu0.b32.cont [8/16] 0.0, 128
        %196 = vxpose.xlu0.b32.cont [9/16] 0.0, 128
        %197 = vxpose.xlu0.b32.cont [10/16] 0.0, 128
        %198 = vxpose.xlu0.b32.cont [11/16] 0.0, 128
        %199 = vxpose.xlu0.b32.cont [12/16] 0.0, 128
        %200 = vxpose.xlu0.b32.cont [13/16] 0.0, 128
        %201 = vxpose.xlu0.b32.cont [14/16] 0.0, 128
        %202 = vxpose.xlu0.b32.cont [15/16] 0.0, 128
        %203 = vxpose.xlu0.b32.end [16/16] 0.0, 128
        %v204 = vpop.trf.xlu0
        %v205 = vpop.trf.xlu0
        %v206 = vpop.trf.xlu0
        %v207 = vpop.trf.xlu0
        %v208 = vpop.trf.xlu0
        %v209 = vpop.trf.xlu0
        %v210 = vpop.trf.xlu0
        %v211 = vpop.trf.xlu0
        %v212 = vpop.trf.xlu0
        %v213 = vpop.trf.xlu0
        %v214 = vpop.trf.xlu0
        %v215 = vpop.trf.xlu0
        %v216 = vpop.trf.xlu0
        %v217 = vpop.trf.xlu0
        %v218 = vpop.trf.xlu0
        %v219 = vpop.trf.xlu0
        %220 = vst [vmem:[#allocation3] ss:$2 sm:$0xff] %v204
        %s221 = scalar_lea.vmem [#allocation3], 16
        %222 = vst [vmem:[%s221] ss:$2 sm:$0xff] %v205
        %s223 = scalar_lea.vmem %s149, 16 [#allocation4]
        %v224 = vld [vmem:[%s223] sm:$0xff]
        %v225 = vld [vmem:[%s223 + $0x8] sm:$0xff]
        %226 = vst [vmem:[#allocation2] ss:$2 sm:$0xff] %v224
        %227 = vst [vmem:[%s175] ss:$2 sm:$0xff] %v225
        %s228 = scalar_lea.vmem %s149, 48 [#allocation4]
        %v229 = vld [vmem:[%s228] sm:$0xff]
        %v230 = vld [vmem:[%s228 + $0x8] sm:$0xff]
        %231 = vst [vmem:[%s180] ss:$2 sm:$0xff] %v229
        %232 = vst [vmem:[%s182] ss:$2 sm:$0xff] %v230
        %v233 = vld [vmem:[#allocation2] sm:$0xff]
        %v234 = vld [vmem:[#allocation2 + $0x8] sm:$0xff]
        %v235 = vld [vmem:[#allocation2 + $0x10] sm:$0xff]
        %v236 = vld [vmem:[#allocation2 + $0x18] sm:$0xff]
        %237 = vxpose.xlu0.b32.start [1/16] %v233, 128
        %238 = vxpose.xlu0.b32.cont [2/16] %v234, 128
        %239 = vxpose.xlu0.b32.cont [3/16] %v235, 128
        %240 = vxpose.xlu0.b32.cont [4/16] %v236, 128
        %241 = vxpose.xlu0.b32.cont [5/16] 0.0, 128
        %242 = vxpose.xlu0.b32.cont [6/16] 0.0, 128
        %243 = vxpose.xlu0.b32.cont [7/16] 0.0, 128
        %244 = vxpose.xlu0.b32.cont [8/16] 0.0, 128
        %245 = vxpose.xlu0.b32.cont [9/16] 0.0, 128
        %246 = vxpose.xlu0.b32.cont [10/16] 0.0, 128
        %247 = vxpose.xlu0.b32.cont [11/16] 0.0, 128
        %248 = vxpose.xlu0.b32.cont [12/16] 0.0, 128
        %249 = vxpose.xlu0.b32.cont [13/16] 0.0, 128
        %250 = vxpose.xlu0.b32.cont [14/16] 0.0, 128
        %251 = vxpose.xlu0.b32.cont [15/16] 0.0, 128
        %252 = vxpose.xlu0.b32.end [16/16] 0.0, 128
        %v253 = vpop.trf.xlu0
        %v254 = vpop.trf.xlu0
        %v255 = vpop.trf.xlu0
        %v256 = vpop.trf.xlu0
        %v257 = vpop.trf.xlu0
        %v258 = vpop.trf.xlu0
        %v259 = vpop.trf.xlu0
        %v260 = vpop.trf.xlu0
        %v261 = vpop.trf.xlu0
        %v262 = vpop.trf.xlu0
        %v263 = vpop.trf.xlu0
        %v264 = vpop.trf.xlu0
        %v265 = vpop.trf.xlu0
        %v266 = vpop.trf.xlu0
        %v267 = vpop.trf.xlu0
        %v268 = vpop.trf.xlu0
        %s269 = scalar_lea.vmem [#allocation3], 1
        %270 = vst [vmem:[%s269] ss:$2 sm:$0xff] %v253
        %s271 = scalar_lea.vmem [#allocation3], 17
        %272 = vst [vmem:[%s271] ss:$2 sm:$0xff] %v254
        %v273 = vld [vmem:[#allocation3] sm:$0xff]
        %v274 = vld [vmem:[#allocation3 + $0x8] sm:$0xff]
        %v275 = vld [vmem:[#allocation3 + $0x10] sm:$0xff]
        %v276 = vld [vmem:[#allocation3 + $0x18] sm:$0xff]
        %277 = vxpose.xlu0.b32.start [1/16] %v273, 128
        %278 = vxpose.xlu0.b32.cont [2/16] %v274, 128
        %279 = vxpose.xlu0.b32.cont [3/16] %v275, 128
        %280 = vxpose.xlu0.b32.cont [4/16] %v276, 128
        %281 = vxpose.xlu0.b32.cont [5/16] 0.0, 128
        %282 = vxpose.xlu0.b32.cont [6/16] 0.0, 128
        %283 = vxpose.xlu0.b32.cont [7/16] 0.0, 128
        %284 = vxpose.xlu0.b32.cont [8/16] 0.0, 128
        %285 = vxpose.xlu0.b32.cont [9/16] 0.0, 128
        %286 = vxpose.xlu0.b32.cont [10/16] 0.0, 128
        %287 = vxpose.xlu0.b32.cont [11/16] 0.0, 128
        %288 = vxpose.xlu0.b32.cont [12/16] 0.0, 128
        %289 = vxpose.xlu0.b32.cont [13/16] 0.0, 128
        %290 = vxpose.xlu0.b32.cont [14/16] 0.0, 128
        %291 = vxpose.xlu0.b32.cont [15/16] 0.0, 128
        %292 = vxpose.xlu0.b32.end [16/16] 0.0, 128
        %v293 = vpop.trf.xlu0
        %v294 = vpop.trf.xlu0
        %v295 = vpop.trf.xlu0
        %v296 = vpop.trf.xlu0
        %v297 = vpop.trf.xlu0
        %v298 = vpop.trf.xlu0
        %v299 = vpop.trf.xlu0
        %v300 = vpop.trf.xlu0
        %v301 = vpop.trf.xlu0
        %v302 = vpop.trf.xlu0
        %v303 = vpop.trf.xlu0
        %v304 = vpop.trf.xlu0
        %v305 = vpop.trf.xlu0
        %v306 = vpop.trf.xlu0
        %v307 = vpop.trf.xlu0
        %v308 = vpop.trf.xlu0
        %vm309 = vcmask 261120
        %310 = vst.msk [vmem:[%s168] sm:$0xff] %vm309, %v293
        %311 = vst.msk [vmem:[%s168 + $0x8] sm:$0xff] %vm309, %v294
        %312 = vst.msk [vmem:[%s168 + $0x10] sm:$0xff] %vm309, %v295
        %313 = vst.msk [vmem:[%s168 + $0x18] sm:$0xff] %vm309, %v296
        %s314 = sand.u32 %s79, 1
        %s315 = scalar_lea.sflag [#allocation6], %s314
        %s316 = sand.u32 %s79, 1
        %s317 = smul.addr %s316, 32
        %s318 = scalar_lea.vmem [#allocation7], %s317
        // Predicated region
        $region29: #{tpu_custom_call.1} parent=23 // pred_check
          %p319 = pneg %p89
        $region30: #{tpu_custom_call.1} parent=23 // pred_check_branch
          %321 = sbr.rel (%p319) target = $region32
        $region31: #{tpu_custom_call.1} parent=23 // pred_region
          %s322 = smul.u32 4, %s25
          %324 = vsyncadd %s315, 0
          %s325 = smul.addr %s24, 4
          %s326 = sadd.s32 %s322, %s325
          %s327 = smul.addr %s23, 4
          %s328 = sadd.s32 %s326, %s327
          %s329 = smul.addr %s328, 8
          %s330 = scalar_lea.hbm %s1, %s329
          %s331 = sshll.u32 %s318, 4
          %s332 = int_to_ptr.vmem [resolvable:$true] %s331
          %s333 = sshll.u32 %s330, 4
          %s334 = int_to_ptr.hbm [resolvable:$true] %s333
          %339 = dma.vmem_to_hbm [thread:$0]  %s332, 512, %s334, %s315, 128, 128, 8
        $region32: #{tpu_custom_call.1} parent=23 // pred_fallthru
          _
      $region24: #{tpu_custom_call.1} parent=5 // pred_fallthru
        _
      %p340 = scmp.le.s32.totalorder 2, %s13
      // Predicated region
      $region33: #{tpu_custom_call.1} parent=5 // pred_check
        %p341 = pneg %p340
      $region34: #{tpu_custom_call.1} parent=5 // pred_check_branch
        %343 = sbr.rel (%p341) target = $region36
      $region35: #{tpu_custom_call.1} parent=5 // pred_region
        %s344 = ssub.s32 %s13, 2
        // Predicated region
        $region37: #{tpu_custom_call.1} parent=35 // pred_check
          %p345 = pneg %p95
        $region38: #{tpu_custom_call.1} parent=35 // pred_check_branch
          %347 = sbr.rel (%p345) target = $region40
        $region39: #{tpu_custom_call.1} parent=35 // pred_region
          %s348 = sand.u32 %s80, 1
          %s349 = scalar_lea.sflag [#allocation6], %s348
          %s350 = sand.u32 %s80, 1
          %s351 = smul.addr %s350, 32
          %s352 = scalar_lea.vmem [#allocation7], %s351
          %354 = dma.done %s349, 512
        $region40: #{tpu_custom_call.1} parent=35 // pred_fallthru
          _
      $region36: #{tpu_custom_call.1} parent=5 // pred_fallthru
        _
    $region6: #{tpu_custom_call.1} parent=1 // loop_footer
      %s17 = sadd.s32 1, %s13
    $region7: #{tpu_custom_call.1} parent=1 // loop_footer_branch
      %12 = sbr.rel target = $region3
    $region8: #{tpu_custom_call.1} parent=1 // loop_exit
      _
    %355 = vsyncpa [#allocation5], 1
    %s356 = scalar_lea.sflag [#allocation5], 1
    %357 = vsyncpa %s356, 1
    %358 = vsyncpa [#allocation6], 1
    %s359 = scalar_lea.sflag [#allocation6], 1
    %360 = vsyncpa %s359, 1

</llo_original>
